<compile_context>
chip_gen: v7x
topology: tpu7x:2x2x1
jax: 0.10.0
libtpu: 0.0.40
codegen_flags: <defaults>
</compile_context>

<pallas_src>
import jax
import jax.numpy as jnp
from jax.experimental import pallas as pl
from jax.experimental.pallas import tpu as pltpu

IN_F = 28 * 28   # 784
H1 = 100
H2 = 100
OUT_F = 10
HP = 128         # hidden dims zero-padded to a full 128-lane width (weights only)


def _round_up(n, m):
    return ((n + m - 1) // m) * m


def mlp_kernel(x_ref, w1_ref, b1_ref, w2_ref, b2_ref, w3_ref, b3_ref, o_ref):
    """One batch tile: (Bt, 784) -> (Bt, 10), fully fused 3-layer MLP forward."""
    mxu_dtype = w1_ref.dtype                         # f32 (exact) or bf16 (v6e/v7x fast path)

    x = x_ref[...].astype(mxu_dtype)                 # cast on the VMEM tile, not in the wrapper

    h1 = jnp.dot(x, w1_ref[...], preferred_element_type=jnp.float32)    # (Bt, 128)
    h1 = jnp.maximum(h1 + b1_ref[...], 0.0)                             # bias + ReLU in f32

    h2 = jnp.dot(h1.astype(mxu_dtype), w2_ref[...],
                 preferred_element_type=jnp.float32)                    # (Bt, 128)
    h2 = jnp.maximum(h2 + b2_ref[...], 0.0)

    out = jnp.dot(h2.astype(mxu_dtype), w3_ref[...],
                  preferred_element_type=jnp.float32)                   # (Bt, 10)
    o_ref[...] = (out + b3_ref[...]).astype(o_ref.dtype)                # dense3 (no ReLU)


def modeldnnpmnist_forward(x, params, *, block_b=1024, mxu_dtype=jnp.float32):
    """x: (B, ...) with prod(...) == 784 (any dtype). Returns (B, 10) float32 logits."""
    B = x.shape[0]
    x2d = x.reshape(B, -1)                   # nn.Flatten; keep producer dtype (no f32 copy)
    assert x2d.shape[1] == IN_F

    mxu_dtype = jnp.dtype(mxu_dtype)

    # Weights: PyTorch (out, in) -> (in, out); hidden dims zero-padded 100 -> 128;
    # cast once to the MXU operand dtype. Biases stay f32 (bias/ReLU done in f32).
    w1p = jnp.zeros((IN_F, HP), mxu_dtype).at[:, :H1].set(params["w1"].T.astype(mxu_dtype))
    w2p = jnp.zeros((HP, HP), mxu_dtype).at[:H1, :H2].set(params["w2"].T.astype(mxu_dtype))
    w3p = jnp.zeros((HP, OUT_F), mxu_dtype).at[:H2, :].set(params["w3"].T.astype(mxu_dtype))
    b1p = jnp.zeros((1, HP), jnp.float32).at[:, :H1].set(params["b1"].astype(jnp.float32))
    b2p = jnp.zeros((1, HP), jnp.float32).at[:, :H2].set(params["b2"].astype(jnp.float32))
    b3 = params["b3"].reshape(1, OUT_F).astype(jnp.float32)

    # Batch tiling: tile must be a multiple of 8 sublanes. No padding of x — grid uses
    # cdiv and Pallas masks the ragged last tile (padded rows never touch valid rows).
    block_b = max(8, _round_up(block_b, 8))
    b8 = _round_up(B, 8)
    bt = min(block_b, b8)
    # Guarantee >= 2 grid steps when the batch allows it, so the "parallel" axis can
    # shard across v7x's two TensorCores (free on single-TC v5e/v6e).
    if pl.cdiv(B, bt) == 1 and b8 >= 16:
        bt = _round_up(pl.cdiv(b8, 2), 8)
    grid = (pl.cdiv(B, bt),)

    # Raise the scoped-VMEM limit only if the tile footprint would exceed the 16 MiB
    # v5e default (double-buffered x + out, double-buffered weights, activation slack).
    x_itemsize = jnp.dtype(x2d.dtype).itemsize
    est_vmem = (
        2 * bt * IN_F * x_itemsize
        + 2 * bt * OUT_F * 4
        + 2 * (IN_F * HP + HP * HP + HP * OUT_F) * mxu_dtype.itemsize
        + 2 * (2 * HP + OUT_F) * 4
        + 3 * bt * HP * 4
    )
    compiler_kwargs = {"dimension_semantics": ("parallel",)}   # megacore over batch
    if est_vmem > 14 * 1024 * 1024:
        compiler_kwargs["vmem_limit_bytes"] = min(int(est_vmem) + (4 << 20), 48 << 20)

    out = pl.pallas_call(
        mlp_kernel,
        out_shape=jax.ShapeDtypeStruct((B, OUT_F), jnp.float32),
        grid_spec=pltpu.PrefetchScalarGridSpec(
            num_scalar_prefetch=0,
            grid=grid,
            in_specs=[
                pl.BlockSpec((bt, IN_F), lambda i: (i, 0)),     # x: tiled over batch
                pl.BlockSpec((IN_F, HP), lambda i: (0, 0)),     # w1: grid-invariant (VMEM resident)
                pl.BlockSpec((1, HP), lambda i: (0, 0)),        # b1
                pl.BlockSpec((HP, HP), lambda i: (0, 0)),       # w2
                pl.BlockSpec((1, HP), lambda i: (0, 0)),        # b2
                pl.BlockSpec((HP, OUT_F), lambda i: (0, 0)),    # w3
                pl.BlockSpec((1, OUT_F), lambda i: (0, 0)),     # b3
            ],
            out_specs=pl.BlockSpec((bt, OUT_F), lambda i: (i, 0)),
        ),
        compiler_params=pltpu.CompilerParams(**compiler_kwargs),
    )(x2d, w1p, b1p, w2p, b2p, w3p, b3)

    return out


def init_params(key):
    """PyTorch nn.Linear-style init: U(-1/sqrt(fan_in), 1/sqrt(fan_in))."""
    ks = jax.random.split(key, 6)

    def lin(kw, kb, fan_in, fan_out):
        bound = 1.0 / jnp.sqrt(fan_in)
        w = jax.random.uniform(kw, (fan_out, fan_in), jnp.float32, -bound, bound)
        b = jax.random.uniform(kb, (fan_out,), jnp.float32, -bound, bound)
        return w, b

    w1, b1 = lin(ks[0], ks[1], IN_F, H1)
    w2, b2 = lin(ks[2], ks[3], H1, H2)
    w3, b3 = lin(ks[4], ks[5], H2, OUT_F)
    return {"w1": w1, "b1": b1, "w2": w2, "b2": b2, "w3": w3, "b3": b3}


def _reference_forward(x, params):
    """Pure-JAX reference of the same forward, for correctness checks."""
    B = x.shape[0]
    h = x.reshape(B, -1).astype(jnp.float32)
    h = jax.nn.relu(h @ params["w1"].T + params["b1"])
    h = jax.nn.relu(h @ params["w2"].T + params["b2"])
    return h @ params["w3"].T + params["b3"]


if __name__ == "__main__":
    key = jax.random.PRNGKey(0)
    k_x, k_p = jax.random.split(key)
    params = init_params(k_p)

    # Small MNIST-shaped batch (B, 1, 28, 28).
    B = 8
    x = jax.random.normal(k_x, (B, 1, 28, 28), jnp.float32)
    y_ref = _reference_forward(x, params)

    # 1) Default path: f32 MXU operands -> exact parity with the PyTorch module.
    y = jax.block_until_ready(modeldnnpmnist_forward(x, params))
    assert y.shape == (B, OUT_F)
    err = jnp.max(jnp.abs(y - y_ref))
    assert jnp.allclose(y, y_ref, atol=2e-3, rtol=2e-3), f"f32 path max abs err = {err}"

    # 2) bf16 MXU-operand path (v6e/v7x perf option; f32 accumulate/bias/ReLU).
    y_bf16 = jax.block_until_ready(
        modeldnnpmnist_forward(x, params, mxu_dtype=jnp.bfloat16))
    err_bf16 = jnp.max(jnp.abs(y_bf16 - y_ref))
    assert jnp.allclose(y_bf16, y_ref, atol=1e-1, rtol=5e-2), (
        f"bf16 path max abs err = {err_bf16}")

    # 3) Multi-tile grid path (weights stay VMEM-resident across batch tiles).
    B2 = 48
    x2 = jax.random.normal(jax.random.PRNGKey(1), (B2, 1, 28, 28), jnp.float32)
    y2 = jax.block_until_ready(modeldnnpmnist_forward(x2, params, block_b=16))
    y2_ref = _reference_forward(x2, params)
    err2 = jnp.max(jnp.abs(y2 - y2_ref))
    assert jnp.allclose(y2, y2_ref, atol=2e-3, rtol=2e-3), f"tiled path max abs err = {err2}"

    print("KERNEL_OK")
</pallas_src>

<mosaic_0001>
module attributes {stable_mosaic.version = 11 : i64} {
  func.func @mlp_kernel(%arg0: i32, %arg1: memref<8x784xf32, #tpu.memory_space<vmem>>, %arg2: memref<784x128xf32, #tpu.memory_space<vmem>>, %arg3: memref<1x128xf32, #tpu.memory_space<vmem>>, %arg4: memref<128x128xf32, #tpu.memory_space<vmem>>, %arg5: memref<1x128xf32, #tpu.memory_space<vmem>>, %arg6: memref<128x10xf32, #tpu.memory_space<vmem>>, %arg7: memref<1x10xf32, #tpu.memory_space<vmem>>, %arg8: memref<8x10xf32, #tpu.memory_space<vmem>>) attributes {dimension_semantics = [#tpu.dimension_semantics<parallel>], iteration_bounds = array<i64: 1>, scalar_prefetch = 0 : i64, scratch_operands = 0 : i64, tpu.core_type = #tpu.core_type<tc>, window_params = [{transform_indices = @transform_0, window_bounds = array<i64: 8, 784>}, {pipeline_mode = #tpu.pipeline_mode<synchronous>, transform_indices = @transform_1, window_bounds = array<i64: 784, 128>}, {pipeline_mode = #tpu.pipeline_mode<synchronous>, transform_indices = @transform_2, window_bounds = array<i64: 1, 128>}, {pipeline_mode = #tpu.pipeline_mode<synchronous>, transform_indices = @transform_3, window_bounds = array<i64: 128, 128>}, {pipeline_mode = #tpu.pipeline_mode<synchronous>, transform_indices = @transform_4, window_bounds = array<i64: 1, 128>}, {pipeline_mode = #tpu.pipeline_mode<synchronous>, transform_indices = @transform_5, window_bounds = array<i64: 128, 10>}, {pipeline_mode = #tpu.pipeline_mode<synchronous>, transform_indices = @transform_6, window_bounds = array<i64: 1, 10>}, {transform_indices = @transform_7, window_bounds = array<i64: 8, 10>}]} {
    %c0 = arith.constant 0 : index
    %c0_0 = arith.constant 0 : index
    %0 = vector.load %arg1[%c0, %c0_0] : memref<8x784xf32, #tpu.memory_space<vmem>>, vector<8x784xf32>
    %c0_1 = arith.constant 0 : index
    %c0_2 = arith.constant 0 : index
    %1 = vector.load %arg2[%c0_1, %c0_2] : memref<784x128xf32, #tpu.memory_space<vmem>>, vector<784x128xf32>
    %cst = arith.constant dense<0.000000e+00> : vector<8x128xf32>
    %2 = tpu.matmul %0, %1, %cst {dimension_numbers = #tpu.dot_dimension_numbers<[1], [0], [0], [1], [0, 0, 1, 1], [], []>} : vector<8x784xf32>, vector<784x128xf32>, vector<8x128xf32> -> vector<8x128xf32>
    %c0_3 = arith.constant 0 : index
    %c0_4 = arith.constant 0 : index
    %3 = vector.load %arg3[%c0_3, %c0_4] : memref<1x128xf32, #tpu.memory_space<vmem>>, vector<1x128xf32>
    %4 = vector.broadcast %3 : vector<1x128xf32> to vector<8x128xf32>
    %5 = arith.addf %2, %4 : vector<8x128xf32>
    %cst_5 = arith.constant 0.000000e+00 : f32
    %6 = vector.broadcast %cst_5 : f32 to vector<8x128xf32>
    %7 = arith.maximumf %5, %6 : vector<8x128xf32>
    %c0_6 = arith.constant 0 : index
    %c0_7 = arith.constant 0 : index
    %8 = vector.load %arg4[%c0_6, %c0_7] : memref<128x128xf32, #tpu.memory_space<vmem>>, vector<128x128xf32>
    %cst_8 = arith.constant dense<0.000000e+00> : vector<8x128xf32>
    %9 = tpu.matmul %7, %8, %cst_8 {dimension_numbers = #tpu.dot_dimension_numbers<[1], [0], [0], [1], [0, 0, 1, 1], [], []>} : vector<8x128xf32>, vector<128x128xf32>, vector<8x128xf32> -> vector<8x128xf32>
    %c0_9 = arith.constant 0 : index
    %c0_10 = arith.constant 0 : index
    %10 = vector.load %arg5[%c0_9, %c0_10] : memref<1x128xf32, #tpu.memory_space<vmem>>, vector<1x128xf32>
    %11 = vector.broadcast %10 : vector<1x128xf32> to vector<8x128xf32>
    %12 = arith.addf %9, %11 : vector<8x128xf32>
    %cst_11 = arith.constant 0.000000e+00 : f32
    %13 = vector.broadcast %cst_11 : f32 to vector<8x128xf32>
    %14 = arith.maximumf %12, %13 : vector<8x128xf32>
    %c0_12 = arith.constant 0 : index
    %c0_13 = arith.constant 0 : index
    %15 = vector.load %arg6[%c0_12, %c0_13] : memref<128x10xf32, #tpu.memory_space<vmem>>, vector<128x10xf32>
    %cst_14 = arith.constant dense<0.000000e+00> : vector<8x10xf32>
    %16 = tpu.matmul %14, %15, %cst_14 {dimension_numbers = #tpu.dot_dimension_numbers<[1], [0], [0], [1], [0, 0, 1, 1], [], []>} : vector<8x128xf32>, vector<128x10xf32>, vector<8x10xf32> -> vector<8x10xf32>
    %c0_15 = arith.constant 0 : index
    %c0_16 = arith.constant 0 : index
    %17 = vector.load %arg7[%c0_15, %c0_16] : memref<1x10xf32, #tpu.memory_space<vmem>>, vector<1x10xf32>
    %18 = vector.broadcast %17 : vector<1x10xf32> to vector<8x10xf32>
    %19 = arith.addf %16, %18 : vector<8x10xf32>
    %c0_17 = arith.constant 0 : index
    %c0_18 = arith.constant 0 : index
    %20 = vector.load %arg8[%c0_17, %c0_18] : memref<8x10xf32, #tpu.memory_space<vmem>>, vector<8x10xf32>
    tpu.vector_store %arg8[%c0_17, %c0_18], %19 {strides = array<i32>} : memref<8x10xf32, #tpu.memory_space<vmem>>, vector<8x10xf32>,
    return
  }
  func.func @transform_0(%arg0: i32) -> (i32, i32) {
    %c0_i32 = arith.constant 0 : i32
    %c0_i32_0 = arith.constant 0 : i32
    return %arg0, %c0_i32 : i32, i32
  }
  func.func @transform_1(%arg0: i32) -> (i32, i32) {
    %c0_i32 = arith.constant 0 : i32
    %c0_i32_0 = arith.constant 0 : i32
    %c0_i32_1 = arith.constant 0 : i32
    return %c0_i32, %c0_i32_0 : i32, i32
  }
  func.func @transform_2(%arg0: i32) -> (i32, i32) {
    %c0_i32 = arith.constant 0 : i32
    %c0_i32_0 = arith.constant 0 : i32
    %c0_i32_1 = arith.constant 0 : i32
    return %c0_i32, %c0_i32_0 : i32, i32
  }
  func.func @transform_3(%arg0: i32) -> (i32, i32) {
    %c0_i32 = arith.constant 0 : i32
    %c0_i32_0 = arith.constant 0 : i32
    %c0_i32_1 = arith.constant 0 : i32
    return %c0_i32, %c0_i32_0 : i32, i32
  }
  func.func @transform_4(%arg0: i32) -> (i32, i32) {
    %c0_i32 = arith.constant 0 : i32
    %c0_i32_0 = arith.constant 0 : i32
    %c0_i32_1 = arith.constant 0 : i32
    return %c0_i32, %c0_i32_0 : i32, i32
  }
  func.func @transform_5(%arg0: i32) -> (i32, i32) {
    %c0_i32 = arith.constant 0 : i32
    %c0_i32_0 = arith.constant 0 : i32
    %c0_i32_1 = arith.constant 0 : i32
    return %c0_i32, %c0_i32_0 : i32, i32
  }
  func.func @transform_6(%arg0: i32) -> (i32, i32) {
    %c0_i32 = arith.constant 0 : i32
    %c0_i32_0 = arith.constant 0 : i32
    %c0_i32_1 = arith.constant 0 : i32
    return %c0_i32, %c0_i32_0 : i32, i32
  }
  func.func @transform_7(%arg0: i32) -> (i32, i32) {
    %c0_i32 = arith.constant 0 : i32
    %c0_i32_0 = arith.constant 0 : i32
    return %arg0, %c0_i32 : i32, i32
  }
}

</mosaic_0001>

<llo_original>
// kernel: tpu_custom_call.1
$region0: #{tpu_custom_call.1}
  #allocation0 [shape = 'u32[]', space=smem, size = 0x4, offset = 0x4, fixed_abs, tag = 'smem constant byte address 0x4 - core index']
  #allocation1 [shape = 'u32[144,128]{1,0:T(1,128)}', space=vmem, size = 0x12000, scoped, tag = 'internal scratch']
  %s0 = inlined_call_operand.hbm [shape: f32[8,784], index: 0, kind: input, shape index: {}]
  %s1 = inlined_call_operand.hbm [shape: f32[784,128], index: 1, kind: input, shape index: {}]
  %s2 = inlined_call_operand.vmem [shape: f32[1,128], index: 2, kind: input, shape index: {}]
  %s3 = inlined_call_operand.vmem [shape: f32[128,128], index: 3, kind: input, shape index: {}]
  %s4 = inlined_call_operand.vmem [shape: f32[1,128], index: 4, kind: input, shape index: {}]
  %s5 = inlined_call_operand.vmem [shape: f32[128,10], index: 5, kind: input, shape index: {}]
  %s6 = inlined_call_operand.vmem [shape: f32[1,10], index: 6, kind: input, shape index: {}]
  %s7 = inlined_call_operand.hbm [shape: f32[8,10], index: 7, kind: output, shape index: {}]
  %s8 = sld [smem:[#allocation0]]
  $region46: #{tpu_custom_call.1} parent=0
    _
  %s10 = ssub.s32 1, %s8
  %s11 = scalar_select 0, %s10, %s8
  $region1: #{tpu_custom_call.1} parent=0
    #allocation2 [shape = 'u8[28672]{0}', space=vmem, size = 0x7000, scoped, tag = 'input window, operand 0, single buffered']
    #allocation3 [shape = 's32[1]{0}', space=sflag, size = 0x4, scoped, tag = 'scoped memory for tpu_custom_call.1']
    #allocation4 [shape = 's32[1]{0}', space=sflag, size = 0x4, scoped, tag = 'scoped memory for tpu_custom_call.1']
    #allocation5 [shape = 'u8[401408]{0}', space=vmem, size = 0x62000, scoped, tag = 'input window, operand 1, single buffered']
    #allocation6 [shape = 's32[1]{0}', space=sflag, size = 0x4, scoped, tag = 'scoped memory for tpu_custom_call.1']
    #allocation7 [shape = 'u8[4096]{0}', space=vmem, size = 0x1000, scoped, tag = 'output window, operand 0, single buffered']
    %12 = vsyncpa [#allocation3], 0
    %13 = vsyncpa [#allocation6], 0
    %14 = vsyncpa [#allocation4], 0
    // Predicated region
    $region2: #{tpu_custom_call.1} parent=1 // pred_check
      _
    $region3: #{tpu_custom_call.1} parent=1 // pred_check_branch
      %16 = sbr.rel (0) target = $region5
    $region4: #{tpu_custom_call.1} parent=1 // pred_region
      %s18 = ssub.s32 896, 896
      %19 = vsyncadd [#allocation3], %s18
      %s21 = sshll.u32 [#allocation2], 4
      %s22 = int_to_ptr.vmem [resolvable:$true] %s21
      %24 = dma.hbm_to_vmem [thread:$0]  %s0, 896, %s22, [#allocation3]
    $region5: #{tpu_custom_call.1} parent=1 // pred_fallthru
      _
    // Predicated region
    $region6: #{tpu_custom_call.1} parent=1 // pred_check
      _
    $region7: #{tpu_custom_call.1} parent=1 // pred_check_branch
      %26 = sbr.rel (0) target = $region9
    $region8: #{tpu_custom_call.1} parent=1 // pred_region
      %s28 = ssub.s32 12544, 12544
      %29 = vsyncadd [#allocation6], %s28
      %s30 = sshll.u32 [#allocation5], 4
      %s31 = int_to_ptr.vmem [resolvable:$true] %s30
      %36 = dma.hbm_to_vmem [thread:$0]  %s1, 12544, %s31, [#allocation6], 128, 128, 8
    $region9: #{tpu_custom_call.1} parent=1 // pred_fallthru
      _
    // Predicated region
    $region10: #{tpu_custom_call.1} parent=1 // pred_check
      _
    $region11: #{tpu_custom_call.1} parent=1 // pred_check_branch
      %38 = sbr.rel (0) target = $region13
    $region12: #{tpu_custom_call.1} parent=1 // pred_region
      _
    $region13: #{tpu_custom_call.1} parent=1 // pred_fallthru
      _
    // Predicated region
    $region14: #{tpu_custom_call.1} parent=1 // pred_check
      _
    $region15: #{tpu_custom_call.1} parent=1 // pred_check_branch
      %40 = sbr.rel (0) target = $region17
    $region16: #{tpu_custom_call.1} parent=1 // pred_region
      _
    $region17: #{tpu_custom_call.1} parent=1 // pred_fallthru
      _
    // Predicated region
    $region18: #{tpu_custom_call.1} parent=1 // pred_check
      _
    $region19: #{tpu_custom_call.1} parent=1 // pred_check_branch
      %42 = sbr.rel (0) target = $region21
    $region20: #{tpu_custom_call.1} parent=1 // pred_region
      _
    $region21: #{tpu_custom_call.1} parent=1 // pred_fallthru
      _
    // Predicated region
    $region22: #{tpu_custom_call.1} parent=1 // pred_check
      _
    $region23: #{tpu_custom_call.1} parent=1 // pred_check_branch
      %44 = sbr.rel (0) target = $region25
    $region24: #{tpu_custom_call.1} parent=1 // pred_region
      _
    $region25: #{tpu_custom_call.1} parent=1 // pred_fallthru
      _
    // Predicated region
    $region26: #{tpu_custom_call.1} parent=1 // pred_check
      _
    $region27: #{tpu_custom_call.1} parent=1 // pred_check_branch
      %46 = sbr.rel (0) target = $region29
    $region28: #{tpu_custom_call.1} parent=1 // pred_region
      _
    $region29: #{tpu_custom_call.1} parent=1 // pred_fallthru
      _
    // Predicated region
    $region30: #{tpu_custom_call.1} parent=1 // pred_check
      _
    $region31: #{tpu_custom_call.1} parent=1 // pred_check_branch
      %48 = sbr.rel (0) target = $region33
    $region32: #{tpu_custom_call.1} parent=1 // pred_region
      %49 = dma.done [#allocation3], 896
    $region33: #{tpu_custom_call.1} parent=1 // pred_fallthru
      _
    // Predicated region
    $region34: #{tpu_custom_call.1} parent=1 // pred_check
      _
    $region35: #{tpu_custom_call.1} parent=1 // pred_check_branch
      %51 = sbr.rel (0) target = $region37
    $region36: #{tpu_custom_call.1} parent=1 // pred_region
      %52 = dma.done [#allocation6], 12544
    $region37: #{tpu_custom_call.1} parent=1 // pred_fallthru
      _
    %v53 = vld [vmem:[#allocation2] sm:$0xff]
    %v54 = vld [vmem:[#allocation2 + $0x8] sm:$0xff]
    %v55 = vld [vmem:[#allocation2 + $0x10] sm:$0xff]
    %v56 = vld [vmem:[#allocation2 + $0x18] sm:$0xff]
    %v57 = vld [vmem:[#allocation2 + $0x20] sm:$0xff]
    %v58 = vld [vmem:[#allocation2 + $0x28] sm:$0xff]
    %v59 = vld [vmem:[#allocation2 + $0x30] sm:$0xff]
    %v60 = vld [vmem:[#allocation5] sm:$0xff]
    %v61 = vld [vmem:[#allocation5 + $0x8] sm:$0xff]
    %v62 = vld [vmem:[#allocation5 + $0x10] sm:$0xff]
    %v63 = vld [vmem:[#allocation5 + $0x18] sm:$0xff]
    %v64 = vld [vmem:[#allocation5 + $0x20] sm:$0xff]
    %v65 = vld [vmem:[#allocation5 + $0x28] sm:$0xff]
    %v66 = vld [vmem:[#allocation5 + $0x30] sm:$0xff]
    %v67 = vld [vmem:[#allocation5 + $0x38] sm:$0xff]
    %v68 = vld [vmem:[#allocation5 + $0x40] sm:$0xff]
    %v69 = vld [vmem:[#allocation5 + $0x48] sm:$0xff]
    %v70 = vld [vmem:[#allocation5 + $0x50] sm:$0xff]
    %v71 = vld [vmem:[#allocation5 + $0x58] sm:$0xff]
    %v72 = vld [vmem:[#allocation5 + $0x60] sm:$0xff]
    %v73 = vld [vmem:[#allocation5 + $0x68] sm:$0xff]
    %v74 = vld [vmem:[#allocation5 + $0x70] sm:$0xff]
    %v75 = vld [vmem:[#allocation5 + $0x78] sm:$0xff]
    %v76 = vld [vmem:[#allocation5 + $0x80] sm:$0xff]
    %v77 = vld [vmem:[#allocation5 + $0x88] sm:$0xff]
    %v78 = vld [vmem:[#allocation5 + $0x90] sm:$0xff]
    %v79 = vld [vmem:[#allocation5 + $0x98] sm:$0xff]
    %v80 = vld [vmem:[#allocation5 + $0xa0] sm:$0xff]
    %v81 = vld [vmem:[#allocation5 + $0xa8] sm:$0xff]
    %v82 = vld [vmem:[#allocation5 + $0xb0] sm:$0xff]
    %v83 = vld [vmem:[#allocation5 + $0xb8] sm:$0xff]
    %v84 = vld [vmem:[#allocation5 + $0xc0] sm:$0xff]
    %v85 = vld [vmem:[#allocation5 + $0xc8] sm:$0xff]
    %v86 = vld [vmem:[#allocation5 + $0xd0] sm:$0xff]
    %v87 = vld [vmem:[#allocation5 + $0xd8] sm:$0xff]
    %v88 = vld [vmem:[#allocation5 + $0xe0] sm:$0xff]
    %v89 = vld [vmem:[#allocation5 + $0xe8] sm:$0xff]
    %v90 = vld [vmem:[#allocation5 + $0xf0] sm:$0xff]
    %v91 = vld [vmem:[#allocation5 + $0xf8] sm:$0xff]
    %v92 = vld [vmem:[#allocation5 + $0x100] sm:$0xff]
    %v93 = vld [vmem:[#allocation5 + $0x108] sm:$0xff]
    %v94 = vld [vmem:[#allocation5 + $0x110] sm:$0xff]
    %v95 = vld [vmem:[#allocation5 + $0x118] sm:$0xff]
    %v96 = vld [vmem:[#allocation5 + $0x120] sm:$0xff]
    %v97 = vld [vmem:[#allocation5 + $0x128] sm:$0xff]
    %v98 = vld [vmem:[#allocation5 + $0x130] sm:$0xff]
    %v99 = vld [vmem:[#allocation5 + $0x138] sm:$0xff]
    %v100 = vld [vmem:[#allocation5 + $0x140] sm:$0xff]
    %v101 = vld [vmem:[#allocation5 + $0x148] sm:$0xff]
    %v102 = vld [vmem:[#allocation5 + $0x150] sm:$0xff]
    %v103 = vld [vmem:[#allocation5 + $0x158] sm:$0xff]
    %v104 = vld [vmem:[#allocation5 + $0x160] sm:$0xff]
    %v105 = vld [vmem:[#allocation5 + $0x168] sm:$0xff]
    %v106 = vld [vmem:[#allocation5 + $0x170] sm:$0xff]
    %v107 = vld [vmem:[#allocation5 + $0x178] sm:$0xff]
    %v108 = vld [vmem:[#allocation5 + $0x180] sm:$0xff]
    %v109 = vld [vmem:[#allocation5 + $0x188] sm:$0xff]
    %v110 = vld [vmem:[#allocation5 + $0x190] sm:$0xff]
    %v111 = vld [vmem:[#allocation5 + $0x198] sm:$0xff]
    %v112 = vld [vmem:[#allocation5 + $0x1a0] sm:$0xff]
    %v113 = vld [vmem:[#allocation5 + $0x1a8] sm:$0xff]
    %v114 = vld [vmem:[#allocation5 + $0x1b0] sm:$0xff]
    %v115 = vld [vmem:[#allocation5 + $0x1b8] sm:$0xff]
    %v116 = vld [vmem:[#allocation5 + $0x1c0] sm:$0xff]
    %v117 = vld [vmem:[#allocation5 + $0x1c8] sm:$0xff]
    %v118 = vld [vmem:[#allocation5 + $0x1d0] sm:$0xff]
    %v119 = vld [vmem:[#allocation5 + $0x1d8] sm:$0xff]
    %v120 = vld [vmem:[#allocation5 + $0x1e0] sm:$0xff]
    %v121 = vld [vmem:[#allocation5 + $0x1e8] sm:$0xff]
    %v122 = vld [vmem:[#allocation5 + $0x1f0] sm:$0xff]
    %v123 = vld [vmem:[#allocation5 + $0x1f8] sm:$0xff]
    %v124 = vld [vmem:[#allocation5 + $0x200] sm:$0xff]
    %v125 = vld [vmem:[#allocation5 + $0x208] sm:$0xff]
    %v126 = vld [vmem:[#allocation5 + $0x210] sm:$0xff]
    %v127 = vld [vmem:[#allocation5 + $0x218] sm:$0xff]
    %v128 = vld [vmem:[#allocation5 + $0x220] sm:$0xff]
    %v129 = vld [vmem:[#allocation5 + $0x228] sm:$0xff]
    %v130 = vld [vmem:[#allocation5 + $0x230] sm:$0xff]
    %v131 = vld [vmem:[#allocation5 + $0x238] sm:$0xff]
    %v132 = vld [vmem:[#allocation5 + $0x240] sm:$0xff]
    %v133 = vld [vmem:[#allocation5 + $0x248] sm:$0xff]
    %v134 = vld [vmem:[#allocation5 + $0x250] sm:$0xff]
    %v135 = vld [vmem:[#allocation5 + $0x258] sm:$0xff]
    %v136 = vld [vmem:[#allocation5 + $0x260] sm:$0xff]
    %v137 = vld [vmem:[#allocation5 + $0x268] sm:$0xff]
    %v138 = vld [vmem:[#allocation5 + $0x270] sm:$0xff]
    %v139 = vld [vmem:[#allocation5 + $0x278] sm:$0xff]
    %v140 = vld [vmem:[#allocation5 + $0x280] sm:$0xff]
    %v141 = vld [vmem:[#allocation5 + $0x288] sm:$0xff]
    %v142 = vld [vmem:[#allocation5 + $0x290] sm:$0xff]
    %v143 = vld [vmem:[#allocation5 + $0x298] sm:$0xff]
    %v144 = vld [vmem:[#allocation5 + $0x2a0] sm:$0xff]
    %v145 = vld [vmem:[#allocation5 + $0x2a8] sm:$0xff]
    %v146 = vld [vmem:[#allocation5 + $0x2b0] sm:$0xff]
    %v147 = vld [vmem:[#allocation5 + $0x2b8] sm:$0xff]
    %v148 = vld [vmem:[#allocation5 + $0x2c0] sm:$0xff]
    %v149 = vld [vmem:[#allocation5 + $0x2c8] sm:$0xff]
    %v150 = vld [vmem:[#allocation5 + $0x2d0] sm:$0xff]
    %v151 = vld [vmem:[#allocation5 + $0x2d8] sm:$0xff]
    %v152 = vld [vmem:[#allocation5 + $0x2e0] sm:$0xff]
    %v153 = vld [vmem:[#allocation5 + $0x2e8] sm:$0xff]
    %v154 = vld [vmem:[#allocation5 + $0x2f0] sm:$0xff]
    %v155 = vld [vmem:[#allocation5 + $0x2f8] sm:$0xff]
    %v156 = vld [vmem:[#allocation5 + $0x300] sm:$0xff]
    %v157 = vld [vmem:[#allocation5 + $0x308] sm:$0xff]
    %v158 = vld [vmem:[%s2] sm:$0x1]
    %v160 = vlaneseq
    %v161 = vshrl.u32 %v160, 7
    %v162 = vsub.s32 0, %v161
    %v163 = vrot.slane %v158, %v162
    %vm165 = vcmask 130048
    %v167 = vsel %vm165, %v59, 0
    %169 = vmatprep.subr.mxu0 0.0
    %170 = vmatpush1.msra.mxu0 %v60
    %171 = vmatprep.subr.mxu0 0.0
    %172 = vmatpush1.msra.mxu0 %v61
    %173 = vmatprep.subr.mxu0 0.0
    %174 = vmatpush1.msra.mxu0 %v62
    %175 = vmatprep.subr.mxu0 0.0
    %176 = vmatpush1.msra.mxu0 %v63
    %177 = vmatprep.subr.mxu0 0.0
    %178 = vmatpush1.msra.mxu0 %v64
    %179 = vmatprep.subr.mxu0 0.0
    %180 = vmatpush1.msra.mxu0 %v65
    %181 = vmatprep.subr.mxu0 0.0
    %182 = vmatpush1.msra.mxu0 %v66
    %183 = vmatprep.subr.mxu0 0.0
    %184 = vmatpush1.msra.mxu0 %v67
    %185 = vmatprep.subr.mxu0 0.0
    %186 = vmatpush1.msra.mxu0 %v68
    %187 = vmatprep.subr.mxu0 0.0
    %188 = vmatpush1.msra.mxu0 %v69
    %189 = vmatprep.subr.mxu0 0.0
    %190 = vmatpush1.msra.mxu0 %v70
    %191 = vmatprep.subr.mxu0 0.0
    %192 = vmatpush1.msra.mxu0 %v71
    %193 = vmatprep.subr.mxu0 0.0
    %194 = vmatpush1.msra.mxu0 %v72
    %195 = vmatprep.subr.mxu0 0.0
    %196 = vmatpush1.msra.mxu0 %v73
    %197 = vmatprep.subr.mxu0 0.0
    %198 = vmatpush1.msra.mxu0 %v74
    %199 = vmatprep.subr.mxu0 0.0
    %200 = vmatpush1.msra.mxu0 %v75
    %201 = vmatprep.subr.mxu0 0.0
    %202 = vmatpush1.msra.mxu0 %v76
    %203 = vmatprep.subr.mxu0 0.0
    %204 = vmatpush1.msra.mxu0 %v77
    %205 = vmatprep.subr.mxu0 0.0
    %206 = vmatpush1.msra.mxu0 %v78
    %207 = vmatprep.subr.mxu0 0.0
    %208 = vmatpush1.msra.mxu0 %v79
    %209 = vmatprep.subr.mxu0 0.0
    %210 = vmatpush1.msra.mxu0 %v80
    %211 = vmatprep.subr.mxu0 0.0
    %212 = vmatpush1.msra.mxu0 %v81
    %213 = vmatprep.subr.mxu0 0.0
    %214 = vmatpush1.msra.mxu0 %v82
    %215 = vmatprep.subr.mxu0 0.0
    %216 = vmatpush1.msra.mxu0 %v83
    %217 = vmatprep.subr.mxu0 0.0
    %218 = vmatpush1.msra.mxu0 %v84
    %219 = vmatprep.subr.mxu0 0.0
    %220 = vmatpush1.msra.mxu0 %v85
    %221 = vmatprep.subr.mxu0 0.0
    %222 = vmatpush1.msra.mxu0 %v86
    %223 = vmatprep.subr.mxu0 0.0
    %224 = vmatpush1.msra.mxu0 %v87
    %225 = vmatprep.subr.mxu0 0.0
    %226 = vmatpush1.msra.mxu0 %v88
    %227 = vmatprep.subr.mxu0 0.0
    %228 = vmatpush1.msra.mxu0 %v89
    %229 = vmatprep.subr.mxu0 0.0
    %230 = vmatpush1.msra.mxu0 %v90
    %231 = vmatprep.subr.mxu0 0.0
    %232 = vmatpush1.msra.mxu0 %v91
    %233 = vmatprep.mubr.f32.mxu0 %v54
    %234 = vmatmul.mubr.f32.gmra.mrb[0].mxu0 %v53
    %v235 = vpop.f32.mrb[0].mxu0
    %v236 = vadd.f32 %v163, %v235
    %v237 = vpop.f32.mrb[0].mxu0
    %238 = vdwg.mxu0
    %239 = vmatprep.subr.mxu0 0.0
    %240 = vmatpush1.msra.mxu0 %v92
    %241 = vmatprep.subr.mxu0 0.0
    %242 = vmatpush1.msra.mxu0 %v93
    %243 = vmatprep.subr.mxu0 0.0
    %244 = vmatpush1.msra.mxu0 %v94
    %245 = vmatprep.subr.mxu0 0.0
    %246 = vmatpush1.msra.mxu0 %v95
    %247 = vmatprep.subr.mxu0 0.0
    %248 = vmatpush1.msra.mxu0 %v96
    %249 = vmatprep.subr.mxu0 0.0
    %250 = vmatpush1.msra.mxu0 %v97
    %251 = vmatprep.subr.mxu0 0.0
    %252 = vmatpush1.msra.mxu0 %v98
    %253 = vmatprep.subr.mxu0 0.0
    %254 = vmatpush1.msra.mxu0 %v99
    %255 = vmatprep.subr.mxu0 0.0
    %256 = vmatpush1.msra.mxu0 %v100
    %257 = vmatprep.subr.mxu0 0.0
    %258 = vmatpush1.msra.mxu0 %v101
    %259 = vmatprep.subr.mxu0 0.0
    %260 = vmatpush1.msra.mxu0 %v102
    %261 = vmatprep.subr.mxu0 0.0
    %262 = vmatpush1.msra.mxu0 %v103
    %263 = vmatprep.subr.mxu0 0.0
    %264 = vmatpush1.msra.mxu0 %v104
    %265 = vmatprep.subr.mxu0 0.0
    %266 = vmatpush1.msra.mxu0 %v105
    %267 = vmatprep.subr.mxu0 0.0
    %268 = vmatpush1.msra.mxu0 %v106
    %269 = vmatprep.subr.mxu0 0.0
    %270 = vmatpush1.msra.mxu0 %v107
    %271 = vmatprep.subr.mxu0 0.0
    %272 = vmatpush1.msra.mxu0 %v108
    %273 = vmatprep.subr.mxu0 0.0
    %274 = vmatpush1.msra.mxu0 %v109
    %275 = vmatprep.subr.mxu0 0.0
    %276 = vmatpush1.msra.mxu0 %v110
    %277 = vmatprep.subr.mxu0 0.0
    %278 = vmatpush1.msra.mxu0 %v111
    %279 = vmatprep.subr.mxu0 0.0
    %280 = vmatpush1.msra.mxu0 %v112
    %281 = vmatprep.subr.mxu0 0.0
    %282 = vmatpush1.msra.mxu0 %v113
    %283 = vmatprep.subr.mxu0 0.0
    %284 = vmatpush1.msra.mxu0 %v114
    %285 = vmatprep.subr.mxu0 0.0
    %286 = vmatpush1.msra.mxu0 %v115
    %287 = vmatprep.subr.mxu0 0.0
    %288 = vmatpush1.msra.mxu0 %v116
    %289 = vmatprep.subr.mxu0 0.0
    %290 = vmatpush1.msra.mxu0 %v117
    %291 = vmatprep.subr.mxu0 0.0
    %292 = vmatpush1.msra.mxu0 %v118
    %293 = vmatprep.subr.mxu0 0.0
    %294 = vmatpush1.msra.mxu0 %v119
    %295 = vmatprep.subr.mxu0 0.0
    %296 = vmatpush1.msra.mxu0 %v120
    %297 = vmatprep.subr.mxu0 0.0
    %298 = vmatpush1.msra.mxu0 %v121
    %299 = vmatprep.subr.mxu0 0.0
    %300 = vmatpush1.msra.mxu0 %v122
    %301 = vmatprep.subr.mxu0 0.0
    %302 = vmatpush1.msra.mxu0 %v123
    %303 = vmatprep.mubr.f32.mxu0 %v56
    %304 = vmatmul.mubr.f32.gmra.mrb[0].mxu0 %v55
    %v305 = vpop.f32.mrb[0].mxu0
    %v306 = vadd.f32 %v236, %v305
    %v307 = vpop.f32.mrb[0].mxu0
    %308 = vdwg.mxu0
    %309 = vmatprep.subr.mxu0 0.0
    %310 = vmatpush1.msra.mxu0 %v124
    %311 = vmatprep.subr.mxu0 0.0
    %312 = vmatpush1.msra.mxu0 %v125
    %313 = vmatprep.subr.mxu0 0.0
    %314 = vmatpush1.msra.mxu0 %v126
    %315 = vmatprep.subr.mxu0 0.0
    %316 = vmatpush1.msra.mxu0 %v127
    %317 = vmatprep.subr.mxu0 0.0
    %318 = vmatpush1.msra.mxu0 %v128
    %319 = vmatprep.subr.mxu0 0.0
    %320 = vmatpush1.msra.mxu0 %v129
    %321 = vmatprep.subr.mxu0 0.0
    %322 = vmatpush1.msra.mxu0 %v130
    %323 = vmatprep.subr.mxu0 0.0
    %324 = vmatpush1.msra.mxu0 %v131
    %325 = vmatprep.subr.mxu0 0.0
    %326 = vmatpush1.msra.mxu0 %v132
    %327 = vmatprep.subr.mxu0 0.0
    %328 = vmatpush1.msra.mxu0 %v133
    %329 = vmatprep.subr.mxu0 0.0
    %330 = vmatpush1.msra.mxu0 %v134
    %331 = vmatprep.subr.mxu0 0.0
    %332 = vmatpush1.msra.mxu0 %v135
    %333 = vmatprep.subr.mxu0 0.0
    %334 = vmatpush1.msra.mxu0 %v136
    %335 = vmatprep.subr.mxu0 0.0
    %336 = vmatpush1.msra.mxu0 %v137
    %337 = vmatprep.subr.mxu0 0.0
    %338 = vmatpush1.msra.mxu0 %v138
    %339 = vmatprep.subr.mxu0 0.0
    %340 = vmatpush1.msra.mxu0 %v139
    %341 = vmatprep.subr.mxu0 0.0
    %342 = vmatpush1.msra.mxu0 %v140
    %343 = vmatprep.subr.mxu0 0.0
    %344 = vmatpush1.msra.mxu0 %v141
    %345 = vmatprep.subr.mxu0 0.0
    %346 = vmatpush1.msra.mxu0 %v142
    %347 = vmatprep.subr.mxu0 0.0
    %348 = vmatpush1.msra.mxu0 %v143
    %349 = vmatprep.subr.mxu0 0.0
    %350 = vmatpush1.msra.mxu0 %v144
    %351 = vmatprep.subr.mxu0 0.0
    %352 = vmatpush1.msra.mxu0 %v145
    %353 = vmatprep.subr.mxu0 0.0
    %354 = vmatpush1.msra.mxu0 %v146
    %355 = vmatprep.subr.mxu0 0.0
    %356 = vmatpush1.msra.mxu0 %v147
    %357 = vmatprep.subr.mxu0 0.0
    %358 = vmatpush1.msra.mxu0 %v148
    %359 = vmatprep.subr.mxu0 0.0
    %360 = vmatpush1.msra.mxu0 %v149
    %361 = vmatprep.subr.mxu0 0.0
    %362 = vmatpush1.msra.mxu0 %v150
    %363 = vmatprep.subr.mxu0 0.0
    %364 = vmatpush1.msra.mxu0 %v151
    %365 = vmatprep.subr.mxu0 0.0
    %366 = vmatpush1.msra.mxu0 %v152
    %367 = vmatprep.subr.mxu0 0.0
    %368 = vmatpush1.msra.mxu0 %v153
    %369 = vmatprep.subr.mxu0 0.0
    %370 = vmatpush1.msra.mxu0 %v154
    %371 = vmatprep.subr.mxu0 0.0
    %372 = vmatpush1.msra.mxu0 %v155
    %373 = vmatprep.mubr.f32.mxu0 %v58
    %374 = vmatmul.mubr.f32.gmra.mrb[0].mxu0 %v57
    %v375 = vpop.f32.mrb[0].mxu0
    %v376 = vadd.f32 %v306, %v375
    %v377 = vpop.f32.mrb[0].mxu0
    %378 = vdwg.mxu0
    %379 = vmatprep.subr.mxu0 0.0
    %380 = vmatpush1.msra.mxu0 %v156
    %381 = vmatprep.subr.mxu0 0.0
    %382 = vmatpush1.msra.mxu0 %v157
    %383 = vmatprep.subr.mxu0 0.0
    %384 = vmatpush1.msra.mxu0 0.0
    %385 = vmatprep.subr.mxu0 0.0
    %386 = vmatpush1.msra.mxu0 0.0
    %387 = vmatprep.subr.mxu0 0.0
    %388 = vmatpush1.msra.mxu0 0.0
    %389 = vmatprep.subr.mxu0 0.0
    %390 = vmatpush1.msra.mxu0 0.0
    %391 = vmatprep.subr.mxu0 0.0
    %392 = vmatpush1.msra.mxu0 0.0
    %393 = vmatprep.subr.mxu0 0.0
    %394 = vmatpush1.msra.mxu0 0.0
    %395 = vmatprep.subr.mxu0 0.0
    %396 = vmatpush1.msra.mxu0 0.0
    %397 = vmatprep.subr.mxu0 0.0
    %398 = vmatpush1.msra.mxu0 0.0
    %399 = vmatprep.subr.mxu0 0.0
    %400 = vmatpush1.msra.mxu0 0.0
    %401 = vmatprep.subr.mxu0 0.0
    %402 = vmatpush1.msra.mxu0 0.0
    %403 = vmatprep.subr.mxu0 0.0
    %404 = vmatpush1.msra.mxu0 0.0
    %405 = vmatprep.subr.mxu0 0.0
    %406 = vmatpush1.msra.mxu0 0.0
    %407 = vmatprep.subr.mxu0 0.0
    %408 = vmatpush1.msra.mxu0 0.0
    %409 = vmatprep.subr.mxu0 0.0
    %410 = vmatpush1.msra.mxu0 0.0
    %411 = vmatprep.subr.mxu0 0.0
    %412 = vmatpush1.msra.mxu0 0.0
    %413 = vmatprep.subr.mxu0 0.0
    %414 = vmatpush1.msra.mxu0 0.0
    %415 = vmatprep.subr.mxu0 0.0
    %416 = vmatpush1.msra.mxu0 0.0
    %417 = vmatprep.subr.mxu0 0.0
    %418 = vmatpush1.msra.mxu0 0.0
    %419 = vmatprep.subr.mxu0 0.0
    %420 = vmatpush1.msra.mxu0 0.0
    %421 = vmatprep.subr.mxu0 0.0
    %422 = vmatpush1.msra.mxu0 0.0
    %423 = vmatprep.subr.mxu0 0.0
    %424 = vmatpush1.msra.mxu0 0.0
    %425 = vmatprep.subr.mxu0 0.0
    %426 = vmatpush1.msra.mxu0 0.0
    %427 = vmatprep.subr.mxu0 0.0
    %428 = vmatpush1.msra.mxu0 0.0
    %429 = vmatprep.subr.mxu0 0.0
    %430 = vmatpush1.msra.mxu0 0.0
    %431 = vmatprep.subr.mxu0 0.0
    %432 = vmatpush1.msra.mxu0 0.0
    %433 = vmatprep.subr.mxu0 0.0
    %434 = vmatpush1.msra.mxu0 0.0
    %435 = vmatprep.subr.mxu0 0.0
    %436 = vmatpush1.msra.mxu0 0.0
    %437 = vmatprep.subr.mxu0 0.0
    %438 = vmatpush1.msra.mxu0 0.0
    %439 = vmatprep.subr.mxu0 0.0
    %440 = vmatpush1.msra.mxu0 0.0
    %441 = vmatprep.subr.mxu0 0.0
    %442 = vmatpush1.msra.mxu0 0.0
    %443 = vmatprep.mubr.f32.mxu0 0.0
    %444 = vmatmul.mubr.f32.gmra.mrb[0].mxu0 %v167
    %v445 = vpop.f32.mrb[0].mxu0
    %v446 = vadd.f32 %v376, %v445
    %v447 = vpop.f32.mrb[0].mxu0
    %448 = vdwg.mxu0
    %v449 = vmax.f32 %v446, 0.0
    %v450 = vld [vmem:[%s3] sm:$0xff]
    %v451 = vld [vmem:[%s3 + $0x8] sm:$0xff]
    %v452 = vld [vmem:[%s3 + $0x10] sm:$0xff]
    %v453 = vld [vmem:[%s3 + $0x18] sm:$0xff]
    %v454 = vld [vmem:[%s3 + $0x20] sm:$0xff]
    %v455 = vld [vmem:[%s3 + $0x28] sm:$0xff]
    %v456 = vld [vmem:[%s3 + $0x30] sm:$0xff]
    %v457 = vld [vmem:[%s3 + $0x38] sm:$0xff]
    %v458 = vld [vmem:[%s3 + $0x40] sm:$0xff]
    %v459 = vld [vmem:[%s3 + $0x48] sm:$0xff]
    %v460 = vld [vmem:[%s3 + $0x50] sm:$0xff]
    %v461 = vld [vmem:[%s3 + $0x58] sm:$0xff]
    %v462 = vld [vmem:[%s3 + $0x60] sm:$0xff]
    %v463 = vld [vmem:[%s3 + $0x68] sm:$0xff]
    %v464 = vld [vmem:[%s3 + $0x70] sm:$0xff]
    %v465 = vld [vmem:[%s3 + $0x78] sm:$0xff]
    %v466 = vld [vmem:[%s4] sm:$0x1]
    %v468 = vlaneseq
    %v469 = vshrl.u32 %v468, 7
    %v470 = vsub.s32 0, %v469
    %v471 = vrot.slane %v466, %v470
    %473 = vmatprep.subr.mxu0 0.0
    %474 = vmatpush1.msra.mxu0 %v450
    %475 = vmatprep.subr.mxu0 0.0
    %476 = vmatpush1.msra.mxu0 %v451
    %477 = vmatprep.subr.mxu0 0.0
    %478 = vmatpush1.msra.mxu0 %v452
    %479 = vmatprep.subr.mxu0 0.0
    %480 = vmatpush1.msra.mxu0 %v453
    %481 = vmatprep.subr.mxu0 0.0
    %482 = vmatpush1.msra.mxu0 %v454
    %483 = vmatprep.subr.mxu0 0.0
    %484 = vmatpush1.msra.mxu0 %v455
    %485 = vmatprep.subr.mxu0 0.0
    %486 = vmatpush1.msra.mxu0 %v456
    %487 = vmatprep.subr.mxu0 0.0
    %488 = vmatpush1.msra.mxu0 %v457
    %489 = vmatprep.subr.mxu0 0.0
    %490 = vmatpush1.msra.mxu0 %v458
    %491 = vmatprep.subr.mxu0 0.0
    %492 = vmatpush1.msra.mxu0 %v459
    %493 = vmatprep.subr.mxu0 0.0
    %494 = vmatpush1.msra.mxu0 %v460
    %495 = vmatprep.subr.mxu0 0.0
    %496 = vmatpush1.msra.mxu0 %v461
    %497 = vmatprep.subr.mxu0 0.0
    %498 = vmatpush1.msra.mxu0 %v462
    %499 = vmatprep.subr.mxu0 0.0
    %500 = vmatpush1.msra.mxu0 %v463
    %501 = vmatprep.subr.mxu0 0.0
    %502 = vmatpush1.msra.mxu0 %v464
    %503 = vmatprep.subr.mxu0 0.0
    %504 = vmatpush1.msra.mxu0 %v465
    %505 = vmatprep.subr.mxu0 0.0
    %506 = vmatpush1.msra.mxu0 0.0
    %507 = vmatprep.subr.mxu0 0.0
    %508 = vmatpush1.msra.mxu0 0.0
    %509 = vmatprep.subr.mxu0 0.0
    %510 = vmatpush1.msra.mxu0 0.0
    %511 = vmatprep.subr.mxu0 0.0
    %512 = vmatpush1.msra.mxu0 0.0
    %513 = vmatprep.subr.mxu0 0.0
    %514 = vmatpush1.msra.mxu0 0.0
    %515 = vmatprep.subr.mxu0 0.0
    %516 = vmatpush1.msra.mxu0 0.0
    %517 = vmatprep.subr.mxu0 0.0
    %518 = vmatpush1.msra.mxu0 0.0
    %519 = vmatprep.subr.mxu0 0.0
    %520 = vmatpush1.msra.mxu0 0.0
    %521 = vmatprep.subr.mxu0 0.0
    %522 = vmatpush1.msra.mxu0 0.0
    %523 = vmatprep.subr.mxu0 0.0
    %524 = vmatpush1.msra.mxu0 0.0
    %525 = vmatprep.subr.mxu0 0.0
    %526 = vmatpush1.msra.mxu0 0.0
    %527 = vmatprep.subr.mxu0 0.0
    %528 = vmatpush1.msra.mxu0 0.0
    %529 = vmatprep.subr.mxu0 0.0
    %530 = vmatpush1.msra.mxu0 0.0
    %531 = vmatprep.subr.mxu0 0.0
    %532 = vmatpush1.msra.mxu0 0.0
    %533 = vmatprep.subr.mxu0 0.0
    %534 = vmatpush1.msra.mxu0 0.0
    %535 = vmatprep.subr.mxu0 0.0
    %536 = vmatpush1.msra.mxu0 0.0
    %537 = vmatprep.mubr.f32.mxu0 0.0
    %538 = vmatmul.mubr.f32.gmra.mrb[0].mxu0 %v449
    %v539 = vpop.f32.mrb[0].mxu0
    %v540 = vadd.f32 %v471, %v539
    %v541 = vpop.f32.mrb[0].mxu0
    %542 = vdwg.mxu0
    %v543 = vmax.f32 %v540, 0.0
    %v544 = vld [vmem:[%s5] sm:$0xff]
    %v545 = vld [vmem:[%s5 + $0x8] sm:$0xff]
    %v546 = vld [vmem:[%s5 + $0x10] sm:$0xff]
    %v547 = vld [vmem:[%s5 + $0x18] sm:$0xff]
    %v548 = vld [vmem:[%s5 + $0x20] sm:$0xff]
    %v549 = vld [vmem:[%s5 + $0x28] sm:$0xff]
    %v550 = vld [vmem:[%s5 + $0x30] sm:$0xff]
    %v551 = vld [vmem:[%s5 + $0x38] sm:$0xff]
    %v552 = vld [vmem:[%s5 + $0x40] sm:$0xff]
    %v553 = vld [vmem:[%s5 + $0x48] sm:$0xff]
    %v554 = vld [vmem:[%s5 + $0x50] sm:$0xff]
    %v555 = vld [vmem:[%s5 + $0x58] sm:$0xff]
    %v556 = vld [vmem:[%s5 + $0x60] sm:$0xff]
    %v557 = vld [vmem:[%s5 + $0x68] sm:$0xff]
    %v558 = vld [vmem:[%s5 + $0x70] sm:$0xff]
    %v559 = vld [vmem:[%s5 + $0x78] sm:$0xff]
    %v560 = vld [vmem:[%s6] sm:$0x1]
    %v562 = vlaneseq
    %v563 = vshrl.u32 %v562, 7
    %v564 = vsub.s32 0, %v563
    %v565 = vrot.slane %v560, %v564
    %567 = vmatprep.subr.mxu0 0.0
    %568 = vmatpush1.msra.mxu0 %v544
    %569 = vmatprep.subr.mxu0 0.0
    %570 = vmatpush1.msra.mxu0 %v545
    %571 = vmatprep.subr.mxu0 0.0
    %572 = vmatpush1.msra.mxu0 %v546
    %573 = vmatprep.subr.mxu0 0.0
    %574 = vmatpush1.msra.mxu0 %v547
    %575 = vmatprep.subr.mxu0 0.0
    %576 = vmatpush1.msra.mxu0 %v548
    %577 = vmatprep.subr.mxu0 0.0
    %578 = vmatpush1.msra.mxu0 %v549
    %579 = vmatprep.subr.mxu0 0.0
    %580 = vmatpush1.msra.mxu0 %v550
    %581 = vmatprep.subr.mxu0 0.0
    %582 = vmatpush1.msra.mxu0 %v551
    %583 = vmatprep.subr.mxu0 0.0
    %584 = vmatpush1.msra.mxu0 %v552
    %585 = vmatprep.subr.mxu0 0.0
    %586 = vmatpush1.msra.mxu0 %v553
    %587 = vmatprep.subr.mxu0 0.0
    %588 = vmatpush1.msra.mxu0 %v554
    %589 = vmatprep.subr.mxu0 0.0
    %590 = vmatpush1.msra.mxu0 %v555
    %591 = vmatprep.subr.mxu0 0.0
    %592 = vmatpush1.msra.mxu0 %v556
    %593 = vmatprep.subr.mxu0 0.0
    %594 = vmatpush1.msra.mxu0 %v557
    %595 = vmatprep.subr.mxu0 0.0
    %596 = vmatpush1.msra.mxu0 %v558
    %597 = vmatprep.subr.mxu0 0.0
    %598 = vmatpush1.msra.mxu0 %v559
    %599 = vmatprep.subr.mxu0 0.0
    %600 = vmatpush1.msra.mxu0 0.0
    %601 = vmatprep.subr.mxu0 0.0
    %602 = vmatpush1.msra.mxu0 0.0
    %603 = vmatprep.subr.mxu0 0.0
    %604 = vmatpush1.msra.mxu0 0.0
    %605 = vmatprep.subr.mxu0 0.0
    %606 = vmatpush1.msra.mxu0 0.0
    %607 = vmatprep.subr.mxu0 0.0
    %608 = vmatpush1.msra.mxu0 0.0
    %609 = vmatprep.subr.mxu0 0.0
    %610 = vmatpush1.msra.mxu0 0.0
    %611 = vmatprep.subr.mxu0 0.0
    %612 = vmatpush1.msra.mxu0 0.0
    %613 = vmatprep.subr.mxu0 0.0
    %614 = vmatpush1.msra.mxu0 0.0
    %615 = vmatprep.subr.mxu0 0.0
    %616 = vmatpush1.msra.mxu0 0.0
    %617 = vmatprep.subr.mxu0 0.0
    %618 = vmatpush1.msra.mxu0 0.0
    %619 = vmatprep.subr.mxu0 0.0
    %620 = vmatpush1.msra.mxu0 0.0
    %621 = vmatprep.subr.mxu0 0.0
    %622 = vmatpush1.msra.mxu0 0.0
    %623 = vmatprep.subr.mxu0 0.0
    %624 = vmatpush1.msra.mxu0 0.0
    %625 = vmatprep.subr.mxu0 0.0
    %626 = vmatpush1.msra.mxu0 0.0
    %627 = vmatprep.subr.mxu0 0.0
    %628 = vmatpush1.msra.mxu0 0.0
    %629 = vmatprep.subr.mxu0 0.0
    %630 = vmatpush1.msra.mxu0 0.0
    %631 = vmatprep.mubr.f32.mxu0 0.0
    %632 = vmatmul.mubr.f32.gmra.mrb[0].mxu0 %v543
    %v633 = vpop.f32.mrb[0].mxu0
    %v634 = vadd.f32 %v565, %v633
    %v635 = vpop.f32.mrb[0].mxu0
    %636 = vdwg.mxu0
    %vm637 = vcmask 80896
    %638 = vst.msk [vmem:[#allocation7] sm:$0xff] %vm637, %v634
    // Predicated region
    $region38: #{tpu_custom_call.1} parent=1 // pred_check
      _
    $region39: #{tpu_custom_call.1} parent=1 // pred_check_branch
      %640 = sbr.rel (0) target = $region41
    $region40: #{tpu_custom_call.1} parent=1 // pred_region
      %s642 = ssub.s32 128, 128
      %643 = vsyncadd [#allocation4], %s642
      %s645 = sshll.u32 [#allocation7], 4
      %s646 = int_to_ptr.vmem [resolvable:$true] %s645
      %648 = dma.vmem_to_hbm [thread:$0]  %s646, 128, %s7, [#allocation4]
    $region41: #{tpu_custom_call.1} parent=1 // pred_fallthru
      _
    // Predicated region
    $region42: #{tpu_custom_call.1} parent=1 // pred_check
      _
    $region43: #{tpu_custom_call.1} parent=1 // pred_check_branch
      %650 = sbr.rel (0) target = $region45
    $region44: #{tpu_custom_call.1} parent=1 // pred_region
      %651 = dma.done [#allocation4], 128
    $region45: #{tpu_custom_call.1} parent=1 // pred_fallthru
      _
    %652 = vsyncpa [#allocation3], 1
    %653 = vsyncpa [#allocation6], 1
    %654 = vsyncpa [#allocation4], 1

</llo_original>
